<compile_context>
chip_gen: v6e
topology: v6e:2x2x1
jax: 0.10.0
libtpu: 0.0.40
codegen_flags: <defaults>
</compile_context>

<pallas_src>
import jax
import jax.numpy as jnp
from jax.experimental import pallas as pl
from jax.experimental.pallas import tpu as pltpu

HIDDEN = 64
PACK = 8  # batch rows packed into the MXU K dimension / output lanes


def _round_up(x, m):
    return ((x + m - 1) // m) * m


def value_net_kernel(x_ref, w1_ref, b1_ref, w2_ref, b2_ref, o_ref):
    # Layer 1 (packed): (tile_rows, 8*D_pad) @ (8*D_pad, 512) on the MXU, f32 acc.
    h = jnp.dot(x_ref[...], w1_ref[...], preferred_element_type=jnp.float32)
    h = jnp.maximum(h + b1_ref[...], 0.0)  # bias broadcast + ReLU on the VPU, f32
    # Layer 2 (packed): (tile_rows, 512) @ block-diagonal (512, 8) -> one value per
    # packed row/lane.  h cast to the streaming dtype for the MXU; acc stays f32.
    v = jnp.dot(h.astype(w2_ref.dtype), w2_ref[...],
                preferred_element_type=jnp.float32)
    o_ref[...] = (v + b2_ref[0, 0]).astype(o_ref.dtype)


def value_network_forward(x, w1, b1, w2, b2, *, tile_b=32768,
                          stream_dtype=jnp.bfloat16):
    """x: [B, state_dim] -> [B, 1] float32  (== relu(x @ w1 + b1) @ w2 + b2)."""
    B, D = x.shape
    assert w1.shape == (D, HIDDEN)

    # Pad the feature dim so 8 packed rows land exactly on a multiple of 128 lanes.
    d_pad = _round_up(max(D, 1), 16)
    packed_d = PACK * d_pad       # multiple of 128 -> lane-dense x tiles
    packed_h = PACK * HIDDEN      # 512

    s_item = jnp.dtype(stream_dtype).itemsize

    # --- VMEM accounting per packed row (counts lane padding & temporaries) ---
    bytes_per_prow = (
        2 * packed_d * s_item            # x tile, double-buffered, lane-dense
        + packed_h * 4                   # h intermediate (f32)
        + packed_h * s_item              # h cast for the layer-2 matmul
        + 2 * max(PACK, 128) * 4         # output block (lane-padded to 128), dbl-buffered
    )
    resident_bytes = 2 * (packed_d * packed_h * s_item            # W1 block-diag
                          + packed_h * max(PACK, 128) * s_item    # W2 block-diag (lane-padded)
                          + 8 * packed_h * 4)                     # b1 tile (sublane-padded)
    vmem_budget = max(24 * 1024 * 1024 - resident_bytes, bytes_per_prow * 8)

    total_prows = pl.cdiv(B, PACK)
    req_rows = max(1, tile_b // PACK)
    tile_rows = max(8, min(req_rows, vmem_budget // bytes_per_prow) // 8 * 8)
    tile_rows = min(tile_rows, _round_up(total_prows, 8))

    num_tiles = pl.cdiv(total_prows, tile_rows)
    # Keep >= 2 grid steps when there is enough work so v7x's 2nd TC gets a share.
    if num_tiles == 1 and total_prows >= 16:
        tile_rows = _round_up(pl.cdiv(total_prows, 2), 8)
        num_tiles = pl.cdiv(total_prows, tile_rows)

    prow_pad = num_tiles * tile_rows
    b_pad = prow_pad * PACK

    # --- Operand prep (cheap wrapper-side XLA ops) ---
    xp = jnp.pad(x.astype(jnp.float32), ((0, b_pad - B), (0, d_pad - D)))
    x_s = xp.astype(stream_dtype).reshape(prow_pad, packed_d)   # free row-major reshape

    eye = jnp.eye(PACK, dtype=jnp.float32)
    w1p = jnp.pad(w1.astype(jnp.float32), ((0, d_pad - D), (0, 0)))          # (D_pad, 64)
    w1_bd = jnp.kron(eye, w1p).astype(stream_dtype)                          # (8*D_pad, 512)
    w2_bd = jnp.kron(eye, w2.astype(jnp.float32).reshape(HIDDEN, 1)
                     ).astype(stream_dtype)                                  # (512, 8)
    b1_t = jnp.tile(b1.astype(jnp.float32).reshape(1, HIDDEN), (1, PACK))    # (1, 512)
    b2_s = b2.astype(jnp.float32).reshape(1, 1)

    flops = 2 * b_pad * (d_pad * HIDDEN + HIDDEN)
    bytes_accessed = int(x_s.size * s_item + w1_bd.size * s_item
                         + w2_bd.size * s_item + b1_t.size * 4 + 4
                         + prow_pad * PACK * 4)

    out = pl.pallas_call(
        value_net_kernel,
        out_shape=jax.ShapeDtypeStruct((prow_pad, PACK), jnp.float32),
        grid=(num_tiles,),
        in_specs=[
            # x: streamed, double-buffered, lane-dense packed batch tiles.
            pl.BlockSpec((tile_rows, packed_d), lambda i: (i, 0)),
            # Block-diagonal weights / tiled bias: constant block index -> VMEM-resident.
            pl.BlockSpec((packed_d, packed_h), lambda i: (0, 0)),
            pl.BlockSpec((1, packed_h), lambda i: (0, 0)),
            pl.BlockSpec((packed_h, PACK), lambda i: (0, 0)),
            # b2 scalar lives in SMEM.
            pl.BlockSpec(memory_space=pltpu.MemorySpace.SMEM),
        ],
        out_specs=pl.BlockSpec((tile_rows, PACK), lambda i: (i, 0)),
        compiler_params=pltpu.CompilerParams(
            dimension_semantics=("parallel",),       # shard batch tiles across TCs on v7x
            vmem_limit_bytes=32 * 1024 * 1024,
        ),
        cost_estimate=pl.CostEstimate(
            flops=int(flops), transcendentals=0, bytes_accessed=bytes_accessed),
    )(x_s, w1_bd, b1_t, w2_bd, b2_s)

    # (prow_pad, 8) row-major == one value per original row; drop padded rows.
    return out.reshape(b_pad, 1)[:B]


def init_params(key, state_dim, hidden=HIDDEN):
    # Mimics PyTorch's uniform(-1/sqrt(fan_in), 1/sqrt(fan_in)) init.
    k1, k2, k3, k4 = jax.random.split(key, 4)
    bound1 = 1.0 / jnp.sqrt(state_dim)
    bound2 = 1.0 / jnp.sqrt(hidden)
    w1 = jax.random.uniform(k1, (state_dim, hidden), jnp.float32, -bound1, bound1)
    b1 = jax.random.uniform(k2, (hidden,), jnp.float32, -bound1, bound1)
    w2 = jax.random.uniform(k3, (hidden, 1), jnp.float32, -bound2, bound2)
    b2 = jax.random.uniform(k4, (1,), jnp.float32, -bound2, bound2)
    return w1, b1, w2, b2


if __name__ == "__main__":
    key = jax.random.PRNGKey(0)
    kx, kp = jax.random.split(key)

    # Small shapes consistent with the module.
    batch, state_dim = 8, 16
    x = jax.random.normal(kx, (batch, state_dim), jnp.float32)
    w1, b1, w2, b2 = init_params(kp, state_dim)
    ref = jnp.maximum(x @ w1 + b1, 0.0) @ w2 + b2

    # f32-streaming path (tight tolerance vs. the XLA reference; same MXU truncation).
    out = jax.block_until_ready(
        value_network_forward(x, w1, b1, w2, b2, stream_dtype=jnp.float32))
    assert out.shape == (batch, 1)
    assert jnp.allclose(out, ref, atol=1e-4, rtol=1e-4), "f32 path mismatch"

    # Default bf16-streaming path; multi-tile grid; batch not a multiple of 8 / tile.
    x2 = jax.random.normal(kx, (1000, state_dim), jnp.float32)
    ref2 = jnp.maximum(x2 @ w1 + b1, 0.0) @ w2 + b2
    out2 = jax.block_until_ready(
        value_network_forward(x2, w1, b1, w2, b2, tile_b=256))
    assert out2.shape == (1000, 1)
    assert jnp.allclose(out2, ref2, atol=5e-2, rtol=5e-2), "bf16 path mismatch"

    # state_dim not a multiple of 16 exercises the feature-dim padding path.
    state_dim3 = 10
    w1b, b1b, w2b, b2b = init_params(jax.random.PRNGKey(1), state_dim3)
    x3 = jax.random.normal(kx, (64, state_dim3), jnp.float32)
    ref3 = jnp.maximum(x3 @ w1b + b1b, 0.0) @ w2b + b2b
    out3 = jax.block_until_ready(
        value_network_forward(x3, w1b, b1b, w2b, b2b, stream_dtype=jnp.float32))
    assert jnp.allclose(out3, ref3, atol=1e-4, rtol=1e-4), "D-padding path mismatch"

    print("KERNEL_OK")
</pallas_src>

<mosaic_0001>
module attributes {stable_mosaic.version = 11 : i64} {
  func.func @value_net_kernel(%arg0: i32, %arg1: memref<8x128xf32, #tpu.memory_space<vmem>>, %arg2: memref<128x512xf32, #tpu.memory_space<vmem>>, %arg3: memref<1x512xf32, #tpu.memory_space<vmem>>, %arg4: memref<512x8xf32, #tpu.memory_space<vmem>>, %arg5: memref<1x1xf32, #tpu.memory_space<smem>>, %arg6: memref<8x8xf32, #tpu.memory_space<vmem>>) attributes {dimension_semantics = [#tpu.dimension_semantics<parallel>], iteration_bounds = array<i64: 1>, scalar_prefetch = 0 : i64, scratch_operands = 0 : i64, tpu.core_type = #tpu.core_type<tc>, window_params = [{transform_indices = @transform_0, window_bounds = array<i64: 8, 128>}, {pipeline_mode = #tpu.pipeline_mode<synchronous>, transform_indices = @transform_1, window_bounds = array<i64: 128, 512>}, {pipeline_mode = #tpu.pipeline_mode<synchronous>, transform_indices = @transform_2, window_bounds = array<i64: 1, 512>}, {pipeline_mode = #tpu.pipeline_mode<synchronous>, transform_indices = @transform_3, window_bounds = array<i64: 512, 8>}, {transform_indices = @transform_4, window_bounds = array<i64: 1, 1>}, {transform_indices = @transform_5, window_bounds = array<i64: 8, 8>}]} {
    %c0 = arith.constant 0 : index
    %c0_0 = arith.constant 0 : index
    %0 = vector.load %arg1[%c0, %c0_0] : memref<8x128xf32, #tpu.memory_space<vmem>>, vector<8x128xf32>
    %c0_1 = arith.constant 0 : index
    %c0_2 = arith.constant 0 : index
    %1 = vector.load %arg2[%c0_1, %c0_2] : memref<128x512xf32, #tpu.memory_space<vmem>>, vector<128x512xf32>
    %cst = arith.constant dense<0.000000e+00> : vector<8x512xf32>
    %2 = tpu.matmul %0, %1, %cst {dimension_numbers = #tpu.dot_dimension_numbers<[1], [0], [0], [1], [0, 0, 1, 1], [], []>} : vector<8x128xf32>, vector<128x512xf32>, vector<8x512xf32> -> vector<8x512xf32>
    %c0_3 = arith.constant 0 : index
    %c0_4 = arith.constant 0 : index
    %3 = vector.load %arg3[%c0_3, %c0_4] : memref<1x512xf32, #tpu.memory_space<vmem>>, vector<1x512xf32>
    %4 = vector.broadcast %3 : vector<1x512xf32> to vector<8x512xf32>
    %5 = arith.addf %2, %4 : vector<8x512xf32>
    %cst_5 = arith.constant 0.000000e+00 : f32
    %6 = vector.broadcast %cst_5 : f32 to vector<8x512xf32>
    %7 = arith.maximumf %5, %6 : vector<8x512xf32>
    %c0_6 = arith.constant 0 : index
    %c0_7 = arith.constant 0 : index
    %8 = vector.load %arg4[%c0_6, %c0_7] : memref<512x8xf32, #tpu.memory_space<vmem>>, vector<512x8xf32>
    %cst_8 = arith.constant dense<0.000000e+00> : vector<8x8xf32>
    %9 = tpu.matmul %7, %8, %cst_8 {dimension_numbers = #tpu.dot_dimension_numbers<[1], [0], [0], [1], [0, 0, 1, 1], [], []>} : vector<8x512xf32>, vector<512x8xf32>, vector<8x8xf32> -> vector<8x8xf32>
    %c0_9 = arith.constant 0 : index
    %c0_10 = arith.constant 0 : index
    %10 = memref.load %arg5[%c0_9, %c0_10] : memref<1x1xf32, #tpu.memory_space<smem>>
    %11 = vector.broadcast %10 : f32 to vector<8x8xf32>
    %12 = arith.addf %9, %11 : vector<8x8xf32>
    %c0_11 = arith.constant 0 : index
    %c0_12 = arith.constant 0 : index
    %13 = vector.load %arg6[%c0_11, %c0_12] : memref<8x8xf32, #tpu.memory_space<vmem>>, vector<8x8xf32>
    tpu.vector_store %arg6[%c0_11, %c0_12], %12 {strides = array<i32>} : memref<8x8xf32, #tpu.memory_space<vmem>>, vector<8x8xf32>,
    return
  }
  func.func @transform_0(%arg0: i32) -> (i32, i32) {
    %c0_i32 = arith.constant 0 : i32
    %c0_i32_0 = arith.constant 0 : i32
    return %arg0, %c0_i32 : i32, i32
  }
  func.func @transform_1(%arg0: i32) -> (i32, i32) {
    %c0_i32 = arith.constant 0 : i32
    %c0_i32_0 = arith.constant 0 : i32
    %c0_i32_1 = arith.constant 0 : i32
    return %c0_i32, %c0_i32_0 : i32, i32
  }
  func.func @transform_2(%arg0: i32) -> (i32, i32) {
    %c0_i32 = arith.constant 0 : i32
    %c0_i32_0 = arith.constant 0 : i32
    %c0_i32_1 = arith.constant 0 : i32
    return %c0_i32, %c0_i32_0 : i32, i32
  }
  func.func @transform_3(%arg0: i32) -> (i32, i32) {
    %c0_i32 = arith.constant 0 : i32
    %c0_i32_0 = arith.constant 0 : i32
    %c0_i32_1 = arith.constant 0 : i32
    return %c0_i32, %c0_i32_0 : i32, i32
  }
  func.func @transform_4(%arg0: i32) -> (i32, i32) {
    %c0_i32 = arith.constant 0 : i32
    %c0_i32_0 = arith.constant 0 : i32
    %c0_i32_1 = arith.constant 0 : i32
    return %c0_i32, %c0_i32_0 : i32, i32
  }
  func.func @transform_5(%arg0: i32) -> (i32, i32) {
    %c0_i32 = arith.constant 0 : i32
    %c0_i32_0 = arith.constant 0 : i32
    return %arg0, %c0_i32 : i32, i32
  }
}

</mosaic_0001>

<llo_original>
// kernel: tpu_custom_call.1
$region0: #{tpu_custom_call.1}
  #allocation0 [shape = 'u32[]', space=smem, size = 0x4, offset = 0x4, fixed_abs, tag = 'smem constant byte address 0x4 - core index']
  #allocation1 [shape = 'u32[144,128]{1,0:T(1,128)}', space=vmem, size = 0x12000, scoped, tag = 'internal scratch']
  #allocation2 [shape = 'f32[1,1]{1,0:T(1,128)S(6)}', space=smem, size = 0x200, scoped, tag = 'scoped memory for tpu_custom_call.1']
  %s0 = inlined_call_operand.vmem [shape: f32[8,128], index: 0, kind: input, shape index: {}]
  %s1 = inlined_call_operand.vmem [shape: f32[128,512], index: 1, kind: input, shape index: {}]
  %s2 = inlined_call_operand.vmem [shape: f32[1,512], index: 2, kind: input, shape index: {}]
  %s3 = inlined_call_operand.vmem [shape: f32[512,8], index: 3, kind: input, shape index: {}]
  %s4 = inlined_call_operand.<no memory space> [shape: f32[1,1], index: 4, kind: input, shape index: {}]
  %s5 = inlined_call_operand.hbm [shape: f32[8,8], index: 5, kind: output, shape index: {}]
  %s6 = sld [smem:[#allocation0]]
  $region30: #{tpu_custom_call.1} parent=0
    _
  %s8 = ssub.s32 1, %s6
  %s9 = scalar_select 0, %s8, %s6
  %10 = sst [smem:[#allocation2]] %s4
  $region1: #{tpu_custom_call.1} parent=0
    #allocation3 [shape = 'u8[4096]{0}', space=vmem, size = 0x1000, scoped, tag = 'output window, operand 0, single buffered']
    #allocation4 [shape = 's32[1]{0}', space=sflag, size = 0x4, scoped, tag = 'scoped memory for tpu_custom_call.1']
    %11 = vsyncpa [#allocation4], 0
    // Predicated region
    $region2: #{tpu_custom_call.1} parent=1 // pred_check
      _
    $region3: #{tpu_custom_call.1} parent=1 // pred_check_branch
      %13 = sbr.rel (0) target = $region5
    $region4: #{tpu_custom_call.1} parent=1 // pred_region
      _
    $region5: #{tpu_custom_call.1} parent=1 // pred_fallthru
      _
    // Predicated region
    $region6: #{tpu_custom_call.1} parent=1 // pred_check
      _
    $region7: #{tpu_custom_call.1} parent=1 // pred_check_branch
      %15 = sbr.rel (0) target = $region9
    $region8: #{tpu_custom_call.1} parent=1 // pred_region
      _
    $region9: #{tpu_custom_call.1} parent=1 // pred_fallthru
      _
    // Predicated region
    $region10: #{tpu_custom_call.1} parent=1 // pred_check
      _
    $region11: #{tpu_custom_call.1} parent=1 // pred_check_branch
      %17 = sbr.rel (0) target = $region13
    $region12: #{tpu_custom_call.1} parent=1 // pred_region
      _
    $region13: #{tpu_custom_call.1} parent=1 // pred_fallthru
      _
    // Predicated region
    $region14: #{tpu_custom_call.1} parent=1 // pred_check
      _
    $region15: #{tpu_custom_call.1} parent=1 // pred_check_branch
      %19 = sbr.rel (0) target = $region17
    $region16: #{tpu_custom_call.1} parent=1 // pred_region
      _
    $region17: #{tpu_custom_call.1} parent=1 // pred_fallthru
      _
    // Predicated region
    $region18: #{tpu_custom_call.1} parent=1 // pred_check
      _
    $region19: #{tpu_custom_call.1} parent=1 // pred_check_branch
      %21 = sbr.rel (0) target = $region21
    $region20: #{tpu_custom_call.1} parent=1 // pred_region
      _
    $region21: #{tpu_custom_call.1} parent=1 // pred_fallthru
      _
    %v22 = vld [vmem:[%s0] sm:$0xff]
    %v23 = vld [vmem:[%s1] sm:$0xff]
    %v24 = vld [vmem:[%s1 + $0x8] sm:$0xff]
    %v25 = vld [vmem:[%s1 + $0x10] sm:$0xff]
    %v26 = vld [vmem:[%s1 + $0x18] sm:$0xff]
    %v27 = vld [vmem:[%s1 + $0x20] sm:$0xff]
    %v28 = vld [vmem:[%s1 + $0x28] sm:$0xff]
    %v29 = vld [vmem:[%s1 + $0x30] sm:$0xff]
    %v30 = vld [vmem:[%s1 + $0x38] sm:$0xff]
    %v31 = vld [vmem:[%s1 + $0x40] sm:$0xff]
    %v32 = vld [vmem:[%s1 + $0x48] sm:$0xff]
    %v33 = vld [vmem:[%s1 + $0x50] sm:$0xff]
    %v34 = vld [vmem:[%s1 + $0x58] sm:$0xff]
    %v35 = vld [vmem:[%s1 + $0x60] sm:$0xff]
    %v36 = vld [vmem:[%s1 + $0x68] sm:$0xff]
    %v37 = vld [vmem:[%s1 + $0x70] sm:$0xff]
    %v38 = vld [vmem:[%s1 + $0x78] sm:$0xff]
    %v39 = vld [vmem:[%s1 + $0x80] sm:$0xff]
    %v40 = vld [vmem:[%s1 + $0x88] sm:$0xff]
    %v41 = vld [vmem:[%s1 + $0x90] sm:$0xff]
    %v42 = vld [vmem:[%s1 + $0x98] sm:$0xff]
    %v43 = vld [vmem:[%s1 + $0xa0] sm:$0xff]
    %v44 = vld [vmem:[%s1 + $0xa8] sm:$0xff]
    %v45 = vld [vmem:[%s1 + $0xb0] sm:$0xff]
    %v46 = vld [vmem:[%s1 + $0xb8] sm:$0xff]
    %v47 = vld [vmem:[%s1 + $0xc0] sm:$0xff]
    %v48 = vld [vmem:[%s1 + $0xc8] sm:$0xff]
    %v49 = vld [vmem:[%s1 + $0xd0] sm:$0xff]
    %v50 = vld [vmem:[%s1 + $0xd8] sm:$0xff]
    %v51 = vld [vmem:[%s1 + $0xe0] sm:$0xff]
    %v52 = vld [vmem:[%s1 + $0xe8] sm:$0xff]
    %v53 = vld [vmem:[%s1 + $0xf0] sm:$0xff]
    %v54 = vld [vmem:[%s1 + $0xf8] sm:$0xff]
    %v55 = vld [vmem:[%s1 + $0x100] sm:$0xff]
    %v56 = vld [vmem:[%s1 + $0x108] sm:$0xff]
    %v57 = vld [vmem:[%s1 + $0x110] sm:$0xff]
    %v58 = vld [vmem:[%s1 + $0x118] sm:$0xff]
    %v59 = vld [vmem:[%s1 + $0x120] sm:$0xff]
    %v60 = vld [vmem:[%s1 + $0x128] sm:$0xff]
    %v61 = vld [vmem:[%s1 + $0x130] sm:$0xff]
    %v62 = vld [vmem:[%s1 + $0x138] sm:$0xff]
    %v63 = vld [vmem:[%s1 + $0x140] sm:$0xff]
    %v64 = vld [vmem:[%s1 + $0x148] sm:$0xff]
    %v65 = vld [vmem:[%s1 + $0x150] sm:$0xff]
    %v66 = vld [vmem:[%s1 + $0x158] sm:$0xff]
    %v67 = vld [vmem:[%s1 + $0x160] sm:$0xff]
    %v68 = vld [vmem:[%s1 + $0x168] sm:$0xff]
    %v69 = vld [vmem:[%s1 + $0x170] sm:$0xff]
    %v70 = vld [vmem:[%s1 + $0x178] sm:$0xff]
    %v71 = vld [vmem:[%s1 + $0x180] sm:$0xff]
    %v72 = vld [vmem:[%s1 + $0x188] sm:$0xff]
    %v73 = vld [vmem:[%s1 + $0x190] sm:$0xff]
    %v74 = vld [vmem:[%s1 + $0x198] sm:$0xff]
    %v75 = vld [vmem:[%s1 + $0x1a0] sm:$0xff]
    %v76 = vld [vmem:[%s1 + $0x1a8] sm:$0xff]
    %v77 = vld [vmem:[%s1 + $0x1b0] sm:$0xff]
    %v78 = vld [vmem:[%s1 + $0x1b8] sm:$0xff]
    %v79 = vld [vmem:[%s1 + $0x1c0] sm:$0xff]
    %v80 = vld [vmem:[%s1 + $0x1c8] sm:$0xff]
    %v81 = vld [vmem:[%s1 + $0x1d0] sm:$0xff]
    %v82 = vld [vmem:[%s1 + $0x1d8] sm:$0xff]
    %v83 = vld [vmem:[%s1 + $0x1e0] sm:$0xff]
    %v84 = vld [vmem:[%s1 + $0x1e8] sm:$0xff]
    %v85 = vld [vmem:[%s1 + $0x1f0] sm:$0xff]
    %v86 = vld [vmem:[%s1 + $0x1f8] sm:$0xff]
    %v87 = vld [vmem:[%s2] sm:$0xf]
    %v89 = vlaneseq
    %v90 = vshrl.u32 %v89, 7
    %v91 = vsub.s32 0, %v90
    %v92 = vrot.slane %v87, %v91
    %v93 = vlaneseq
    %v94 = vshrl.u32 %v93, 7
    %v95 = vsub.s32 1, %v94
    %v96 = vrot.slane %v87, %v95
    %v97 = vlaneseq
    %v98 = vshrl.u32 %v97, 7
    %v99 = vsub.s32 2, %v98
    %v100 = vrot.slane %v87, %v99
    %v101 = vlaneseq
    %v102 = vshrl.u32 %v101, 7
    %v103 = vsub.s32 3, %v102
    %v104 = vrot.slane %v87, %v103
    %109 = vmatprep.subr.mxu0 %v84
    %110 = vmatpush1.msra.mxu0 %v83
    %111 = vmatprep.subr.mxu0 %v80
    %112 = vmatpush1.msra.mxu0 %v79
    %113 = vmatprep.subr.mxu0 %v76
    %114 = vmatpush1.msra.mxu0 %v75
    %115 = vmatprep.subr.mxu0 %v72
    %116 = vmatpush1.msra.mxu0 %v71
    %117 = vmatprep.subr.mxu0 %v68
    %118 = vmatpush1.msra.mxu0 %v67
    %119 = vmatprep.subr.mxu0 %v64
    %120 = vmatpush1.msra.mxu0 %v63
    %121 = vmatprep.subr.mxu0 %v60
    %122 = vmatpush1.msra.mxu0 %v59
    %123 = vmatprep.subr.mxu0 %v56
    %124 = vmatpush1.msra.mxu0 %v55
    %125 = vmatprep.subr.mxu0 %v52
    %126 = vmatpush1.msra.mxu0 %v51
    %127 = vmatprep.subr.mxu0 %v48
    %128 = vmatpush1.msra.mxu0 %v47
    %129 = vmatprep.subr.mxu0 %v44
    %130 = vmatpush1.msra.mxu0 %v43
    %131 = vmatprep.subr.mxu0 %v40
    %132 = vmatpush1.msra.mxu0 %v39
    %133 = vmatprep.subr.mxu0 %v36
    %134 = vmatpush1.msra.mxu0 %v35
    %135 = vmatprep.subr.mxu0 %v32
    %136 = vmatpush1.msra.mxu0 %v31
    %137 = vmatprep.subr.mxu0 %v28
    %138 = vmatpush1.msra.mxu0 %v27
    %139 = vmatprep.subr.mxu0 %v24
    %140 = vmatpush1.msra.mxu0 %v23
    %141 = vmatprep.subr.mxu0 0.0
    %142 = vmatpush2.msra.mxu0 0.0
    %143 = vmatprep.subr.mxu0 0.0
    %144 = vmatpush2.msra.mxu0 0.0
    %145 = vmatprep.subr.mxu0 0.0
    %146 = vmatpush2.msra.mxu0 0.0
    %147 = vmatprep.subr.mxu0 0.0
    %148 = vmatpush2.msra.mxu0 0.0
    %149 = vmatprep.subr.mxu0 0.0
    %150 = vmatpush2.msra.mxu0 0.0
    %151 = vmatprep.subr.mxu0 0.0
    %152 = vmatpush2.msra.mxu0 0.0
    %153 = vmatprep.subr.mxu0 0.0
    %154 = vmatpush2.msra.mxu0 0.0
    %155 = vmatprep.subr.mxu0 0.0
    %156 = vmatpush2.msra.mxu0 0.0
    %157 = vmatprep.subr.mxu0 0.0
    %158 = vmatpush2.msra.mxu0 0.0
    %159 = vmatprep.subr.mxu0 0.0
    %160 = vmatpush2.msra.mxu0 0.0
    %161 = vmatprep.subr.mxu0 0.0
    %162 = vmatpush2.msra.mxu0 0.0
    %163 = vmatprep.subr.mxu0 0.0
    %164 = vmatpush2.msra.mxu0 0.0
    %165 = vmatprep.subr.mxu0 0.0
    %166 = vmatpush2.msra.mxu0 0.0
    %167 = vmatprep.subr.mxu0 0.0
    %168 = vmatpush2.msra.mxu0 0.0
    %169 = vmatprep.subr.mxu0 0.0
    %170 = vmatpush2.msra.mxu0 0.0
    %171 = vmatprep.subr.mxu0 0.0
    %172 = vmatpush2.msra.mxu0 0.0
    %173 = vmatprep.mubr.f32.mxu0 0.0
    %174 = vmatmul.mubr.f32.gmra.mxu0 %v22
    %v175 = vpop.f32.mrf.mxu0
    %v176 = vadd.f32 %v92, %v175
    %v177 = vpop.f32.mrf.mxu0
    %v178 = vadd.f32 %v96, %v177
    %179 = vdwg.mxu0
    %180 = vmatprep.subr.mxu0 %v86
    %181 = vmatpush1.msra.mxu0 %v85
    %182 = vmatprep.subr.mxu0 %v82
    %183 = vmatpush1.msra.mxu0 %v81
    %184 = vmatprep.subr.mxu0 %v78
    %185 = vmatpush1.msra.mxu0 %v77
    %186 = vmatprep.subr.mxu0 %v74
    %187 = vmatpush1.msra.mxu0 %v73
    %188 = vmatprep.subr.mxu0 %v70
    %189 = vmatpush1.msra.mxu0 %v69
    %190 = vmatprep.subr.mxu0 %v66
    %191 = vmatpush1.msra.mxu0 %v65
    %192 = vmatprep.subr.mxu0 %v62
    %193 = vmatpush1.msra.mxu0 %v61
    %194 = vmatprep.subr.mxu0 %v58
    %195 = vmatpush1.msra.mxu0 %v57
    %196 = vmatprep.subr.mxu0 %v54
    %197 = vmatpush1.msra.mxu0 %v53
    %198 = vmatprep.subr.mxu0 %v50
    %199 = vmatpush1.msra.mxu0 %v49
    %200 = vmatprep.subr.mxu0 %v46
    %201 = vmatpush1.msra.mxu0 %v45
    %202 = vmatprep.subr.mxu0 %v42
    %203 = vmatpush1.msra.mxu0 %v41
    %204 = vmatprep.subr.mxu0 %v38
    %205 = vmatpush1.msra.mxu0 %v37
    %206 = vmatprep.subr.mxu0 %v34
    %207 = vmatpush1.msra.mxu0 %v33
    %208 = vmatprep.subr.mxu0 %v30
    %209 = vmatpush1.msra.mxu0 %v29
    %210 = vmatprep.subr.mxu0 %v26
    %211 = vmatpush1.msra.mxu0 %v25
    %212 = vmatprep.subr.mxu0 0.0
    %213 = vmatpush2.msra.mxu0 0.0
    %214 = vmatprep.subr.mxu0 0.0
    %215 = vmatpush2.msra.mxu0 0.0
    %216 = vmatprep.subr.mxu0 0.0
    %217 = vmatpush2.msra.mxu0 0.0
    %218 = vmatprep.subr.mxu0 0.0
    %219 = vmatpush2.msra.mxu0 0.0
    %220 = vmatprep.subr.mxu0 0.0
    %221 = vmatpush2.msra.mxu0 0.0
    %222 = vmatprep.subr.mxu0 0.0
    %223 = vmatpush2.msra.mxu0 0.0
    %224 = vmatprep.subr.mxu0 0.0
    %225 = vmatpush2.msra.mxu0 0.0
    %226 = vmatprep.subr.mxu0 0.0
    %227 = vmatpush2.msra.mxu0 0.0
    %228 = vmatprep.subr.mxu0 0.0
    %229 = vmatpush2.msra.mxu0 0.0
    %230 = vmatprep.subr.mxu0 0.0
    %231 = vmatpush2.msra.mxu0 0.0
    %232 = vmatprep.subr.mxu0 0.0
    %233 = vmatpush2.msra.mxu0 0.0
    %234 = vmatprep.subr.mxu0 0.0
    %235 = vmatpush2.msra.mxu0 0.0
    %236 = vmatprep.subr.mxu0 0.0
    %237 = vmatpush2.msra.mxu0 0.0
    %238 = vmatprep.subr.mxu0 0.0
    %239 = vmatpush2.msra.mxu0 0.0
    %240 = vmatprep.subr.mxu0 0.0
    %241 = vmatpush2.msra.mxu0 0.0
    %242 = vmatprep.subr.mxu0 0.0
    %243 = vmatpush2.msra.mxu0 0.0
    %244 = vmatprep.mubr.f32.mxu0 0.0
    %245 = vmatmul.mubr.f32.gmra.mxu0 %v22
    %v246 = vpop.f32.mrf.mxu0
    %v247 = vadd.f32 %v100, %v246
    %v248 = vpop.f32.mrf.mxu0
    %v249 = vadd.f32 %v104, %v248
    %250 = vdwg.mxu0
    %v251 = vmax.f32 %v176, 0.0
    %v252 = vmax.f32 %v178, 0.0
    %v253 = vmax.f32 %v247, 0.0
    %v254 = vmax.f32 %v249, 0.0
    %v255 = vld [vmem:[%s3] sm:$0xff]
    %v256 = vld [vmem:[%s3 + $0x8] sm:$0xff]
    %v257 = vld [vmem:[%s3 + $0x10] sm:$0xff]
    %v258 = vld [vmem:[%s3 + $0x18] sm:$0xff]
    %v259 = vld [vmem:[%s3 + $0x20] sm:$0xff]
    %v260 = vld [vmem:[%s3 + $0x28] sm:$0xff]
    %v261 = vld [vmem:[%s3 + $0x30] sm:$0xff]
    %v262 = vld [vmem:[%s3 + $0x38] sm:$0xff]
    %v263 = vld [vmem:[%s3 + $0x40] sm:$0xff]
    %v264 = vld [vmem:[%s3 + $0x48] sm:$0xff]
    %v265 = vld [vmem:[%s3 + $0x50] sm:$0xff]
    %v266 = vld [vmem:[%s3 + $0x58] sm:$0xff]
    %v267 = vld [vmem:[%s3 + $0x60] sm:$0xff]
    %v268 = vld [vmem:[%s3 + $0x68] sm:$0xff]
    %v269 = vld [vmem:[%s3 + $0x70] sm:$0xff]
    %v270 = vld [vmem:[%s3 + $0x78] sm:$0xff]
    %v271 = vld [vmem:[%s3 + $0x80] sm:$0xff]
    %v272 = vld [vmem:[%s3 + $0x88] sm:$0xff]
    %v273 = vld [vmem:[%s3 + $0x90] sm:$0xff]
    %v274 = vld [vmem:[%s3 + $0x98] sm:$0xff]
    %v275 = vld [vmem:[%s3 + $0xa0] sm:$0xff]
    %v276 = vld [vmem:[%s3 + $0xa8] sm:$0xff]
    %v277 = vld [vmem:[%s3 + $0xb0] sm:$0xff]
    %v278 = vld [vmem:[%s3 + $0xb8] sm:$0xff]
    %v279 = vld [vmem:[%s3 + $0xc0] sm:$0xff]
    %v280 = vld [vmem:[%s3 + $0xc8] sm:$0xff]
    %v281 = vld [vmem:[%s3 + $0xd0] sm:$0xff]
    %v282 = vld [vmem:[%s3 + $0xd8] sm:$0xff]
    %v283 = vld [vmem:[%s3 + $0xe0] sm:$0xff]
    %v284 = vld [vmem:[%s3 + $0xe8] sm:$0xff]
    %v285 = vld [vmem:[%s3 + $0xf0] sm:$0xff]
    %v286 = vld [vmem:[%s3 + $0xf8] sm:$0xff]
    %v287 = vld [vmem:[%s3 + $0x100] sm:$0xff]
    %v288 = vld [vmem:[%s3 + $0x108] sm:$0xff]
    %v289 = vld [vmem:[%s3 + $0x110] sm:$0xff]
    %v290 = vld [vmem:[%s3 + $0x118] sm:$0xff]
    %v291 = vld [vmem:[%s3 + $0x120] sm:$0xff]
    %v292 = vld [vmem:[%s3 + $0x128] sm:$0xff]
    %v293 = vld [vmem:[%s3 + $0x130] sm:$0xff]
    %v294 = vld [vmem:[%s3 + $0x138] sm:$0xff]
    %v295 = vld [vmem:[%s3 + $0x140] sm:$0xff]
    %v296 = vld [vmem:[%s3 + $0x148] sm:$0xff]
    %v297 = vld [vmem:[%s3 + $0x150] sm:$0xff]
    %v298 = vld [vmem:[%s3 + $0x158] sm:$0xff]
    %v299 = vld [vmem:[%s3 + $0x160] sm:$0xff]
    %v300 = vld [vmem:[%s3 + $0x168] sm:$0xff]
    %v301 = vld [vmem:[%s3 + $0x170] sm:$0xff]
    %v302 = vld [vmem:[%s3 + $0x178] sm:$0xff]
    %v303 = vld [vmem:[%s3 + $0x180] sm:$0xff]
    %v304 = vld [vmem:[%s3 + $0x188] sm:$0xff]
    %v305 = vld [vmem:[%s3 + $0x190] sm:$0xff]
    %v306 = vld [vmem:[%s3 + $0x198] sm:$0xff]
    %v307 = vld [vmem:[%s3 + $0x1a0] sm:$0xff]
    %v308 = vld [vmem:[%s3 + $0x1a8] sm:$0xff]
    %v309 = vld [vmem:[%s3 + $0x1b0] sm:$0xff]
    %v310 = vld [vmem:[%s3 + $0x1b8] sm:$0xff]
    %v311 = vld [vmem:[%s3 + $0x1c0] sm:$0xff]
    %v312 = vld [vmem:[%s3 + $0x1c8] sm:$0xff]
    %v313 = vld [vmem:[%s3 + $0x1d0] sm:$0xff]
    %v314 = vld [vmem:[%s3 + $0x1d8] sm:$0xff]
    %v315 = vld [vmem:[%s3 + $0x1e0] sm:$0xff]
    %v316 = vld [vmem:[%s3 + $0x1e8] sm:$0xff]
    %v317 = vld [vmem:[%s3 + $0x1f0] sm:$0xff]
    %v318 = vld [vmem:[%s3 + $0x1f8] sm:$0xff]
    %s319 = sld [smem:[#allocation2]]
    %v320 = vstv %s319
    %321 = vmatprep.subr.mxu0 0.0
    %322 = vmatpush1.msra.mxu0 %v270
    %323 = vmatprep.subr.mxu0 0.0
    %324 = vmatpush1.msra.mxu0 %v269
    %325 = vmatprep.subr.mxu0 0.0
    %326 = vmatpush1.msra.mxu0 %v268
    %327 = vmatprep.subr.mxu0 0.0
    %328 = vmatpush1.msra.mxu0 %v267
    %329 = vmatprep.subr.mxu0 0.0
    %330 = vmatpush1.msra.mxu0 %v266
    %331 = vmatprep.subr.mxu0 0.0
    %332 = vmatpush1.msra.mxu0 %v265
    %333 = vmatprep.subr.mxu0 0.0
    %334 = vmatpush1.msra.mxu0 %v264
    %335 = vmatprep.subr.mxu0 0.0
    %336 = vmatpush1.msra.mxu0 %v263
    %337 = vmatprep.subr.mxu0 0.0
    %338 = vmatpush1.msra.mxu0 %v262
    %339 = vmatprep.subr.mxu0 0.0
    %340 = vmatpush1.msra.mxu0 %v261
    %341 = vmatprep.subr.mxu0 0.0
    %342 = vmatpush1.msra.mxu0 %v260
    %343 = vmatprep.subr.mxu0 0.0
    %344 = vmatpush1.msra.mxu0 %v259
    %345 = vmatprep.subr.mxu0 0.0
    %346 = vmatpush1.msra.mxu0 %v258
    %347 = vmatprep.subr.mxu0 0.0
    %348 = vmatpush1.msra.mxu0 %v257
    %349 = vmatprep.subr.mxu0 0.0
    %350 = vmatpush1.msra.mxu0 %v256
    %351 = vmatprep.subr.mxu0 0.0
    %352 = vmatpush1.msra.mxu0 %v255
    %353 = vmatprep.subr.mxu0 0.0
    %354 = vmatpush2.msra.mxu0 %v286
    %355 = vmatprep.subr.mxu0 0.0
    %356 = vmatpush2.msra.mxu0 %v285
    %357 = vmatprep.subr.mxu0 0.0
    %358 = vmatpush2.msra.mxu0 %v284
    %359 = vmatprep.subr.mxu0 0.0
    %360 = vmatpush2.msra.mxu0 %v283
    %361 = vmatprep.subr.mxu0 0.0
    %362 = vmatpush2.msra.mxu0 %v282
    %363 = vmatprep.subr.mxu0 0.0
    %364 = vmatpush2.msra.mxu0 %v281
    %365 = vmatprep.subr.mxu0 0.0
    %366 = vmatpush2.msra.mxu0 %v280
    %367 = vmatprep.subr.mxu0 0.0
    %368 = vmatpush2.msra.mxu0 %v279
    %369 = vmatprep.subr.mxu0 0.0
    %370 = vmatpush2.msra.mxu0 %v278
    %371 = vmatprep.subr.mxu0 0.0
    %372 = vmatpush2.msra.mxu0 %v277
    %373 = vmatprep.subr.mxu0 0.0
    %374 = vmatpush2.msra.mxu0 %v276
    %375 = vmatprep.subr.mxu0 0.0
    %376 = vmatpush2.msra.mxu0 %v275
    %377 = vmatprep.subr.mxu0 0.0
    %378 = vmatpush2.msra.mxu0 %v274
    %379 = vmatprep.subr.mxu0 0.0
    %380 = vmatpush2.msra.mxu0 %v273
    %381 = vmatprep.subr.mxu0 0.0
    %382 = vmatpush2.msra.mxu0 %v272
    %383 = vmatprep.subr.mxu0 0.0
    %384 = vmatpush2.msra.mxu0 %v271
    %385 = vmatprep.mubr.f32.mxu0 %v252
    %386 = vmatmul.mubr.f32.gmra.mxu0 %v251
    %v387 = vpop.f32.mrf.mxu0
    %v388 = vadd.f32 %v320, %v387
    %v389 = vpop.f32.mrf.mxu0
    %390 = vdwg.mxu0
    %391 = vmatprep.subr.mxu0 0.0
    %392 = vmatpush1.msra.mxu0 %v302
    %393 = vmatprep.subr.mxu0 0.0
    %394 = vmatpush1.msra.mxu0 %v301
    %395 = vmatprep.subr.mxu0 0.0
    %396 = vmatpush1.msra.mxu0 %v300
    %397 = vmatprep.subr.mxu0 0.0
    %398 = vmatpush1.msra.mxu0 %v299
    %399 = vmatprep.subr.mxu0 0.0
    %400 = vmatpush1.msra.mxu0 %v298
    %401 = vmatprep.subr.mxu0 0.0
    %402 = vmatpush1.msra.mxu0 %v297
    %403 = vmatprep.subr.mxu0 0.0
    %404 = vmatpush1.msra.mxu0 %v296
    %405 = vmatprep.subr.mxu0 0.0
    %406 = vmatpush1.msra.mxu0 %v295
    %407 = vmatprep.subr.mxu0 0.0
    %408 = vmatpush1.msra.mxu0 %v294
    %409 = vmatprep.subr.mxu0 0.0
    %410 = vmatpush1.msra.mxu0 %v293
    %411 = vmatprep.subr.mxu0 0.0
    %412 = vmatpush1.msra.mxu0 %v292
    %413 = vmatprep.subr.mxu0 0.0
    %414 = vmatpush1.msra.mxu0 %v291
    %415 = vmatprep.subr.mxu0 0.0
    %416 = vmatpush1.msra.mxu0 %v290
    %417 = vmatprep.subr.mxu0 0.0
    %418 = vmatpush1.msra.mxu0 %v289
    %419 = vmatprep.subr.mxu0 0.0
    %420 = vmatpush1.msra.mxu0 %v288
    %421 = vmatprep.subr.mxu0 0.0
    %422 = vmatpush1.msra.mxu0 %v287
    %423 = vmatprep.subr.mxu0 0.0
    %424 = vmatpush2.msra.mxu0 %v318
    %425 = vmatprep.subr.mxu0 0.0
    %426 = vmatpush2.msra.mxu0 %v317
    %427 = vmatprep.subr.mxu0 0.0
    %428 = vmatpush2.msra.mxu0 %v316
    %429 = vmatprep.subr.mxu0 0.0
    %430 = vmatpush2.msra.mxu0 %v315
    %431 = vmatprep.subr.mxu0 0.0
    %432 = vmatpush2.msra.mxu0 %v314
    %433 = vmatprep.subr.mxu0 0.0
    %434 = vmatpush2.msra.mxu0 %v313
    %435 = vmatprep.subr.mxu0 0.0
    %436 = vmatpush2.msra.mxu0 %v312
    %437 = vmatprep.subr.mxu0 0.0
    %438 = vmatpush2.msra.mxu0 %v311
    %439 = vmatprep.subr.mxu0 0.0
    %440 = vmatpush2.msra.mxu0 %v310
    %441 = vmatprep.subr.mxu0 0.0
    %442 = vmatpush2.msra.mxu0 %v309
    %443 = vmatprep.subr.mxu0 0.0
    %444 = vmatpush2.msra.mxu0 %v308
    %445 = vmatprep.subr.mxu0 0.0
    %446 = vmatpush2.msra.mxu0 %v307
    %447 = vmatprep.subr.mxu0 0.0
    %448 = vmatpush2.msra.mxu0 %v306
    %449 = vmatprep.subr.mxu0 0.0
    %450 = vmatpush2.msra.mxu0 %v305
    %451 = vmatprep.subr.mxu0 0.0
    %452 = vmatpush2.msra.mxu0 %v304
    %453 = vmatprep.subr.mxu0 0.0
    %454 = vmatpush2.msra.mxu0 %v303
    %455 = vmatprep.mubr.f32.mxu0 %v254
    %456 = vmatmul.mubr.f32.gmra.mxu0 %v253
    %v457 = vpop.f32.mrf.mxu0
    %v458 = vadd.f32 %v388, %v457
    %v459 = vpop.f32.mrf.mxu0
    %460 = vdwg.mxu0
    %vm461 = vcmask 64512
    %462 = vst.msk [vmem:[#allocation3] sm:$0xff] %vm461, %v458
    // Predicated region
    $region22: #{tpu_custom_call.1} parent=1 // pred_check
      _
    $region23: #{tpu_custom_call.1} parent=1 // pred_check_branch
      %464 = sbr.rel (0) target = $region25
    $region24: #{tpu_custom_call.1} parent=1 // pred_region
      %s466 = ssub.s32 128, 128
      %467 = vsyncadd [#allocation4], %s466
      %s469 = sshll.u32 [#allocation3], 4
      %s470 = int_to_ptr.vmem [resolvable:$true] %s469
      %472 = dma.vmem_to_hbm [thread:$0]  %s470, 128, %s5, [#allocation4]
    $region25: #{tpu_custom_call.1} parent=1 // pred_fallthru
      _
    // Predicated region
    $region26: #{tpu_custom_call.1} parent=1 // pred_check
      _
    $region27: #{tpu_custom_call.1} parent=1 // pred_check_branch
      %474 = sbr.rel (0) target = $region29
    $region28: #{tpu_custom_call.1} parent=1 // pred_region
      %475 = dma.done [#allocation4], 128
    $region29: #{tpu_custom_call.1} parent=1 // pred_fallthru
      _
    %476 = vsyncpa [#allocation4], 1

</llo_original>
